<compile_context>
chip_gen: v5e
topology: v5e:2x2
jax: 0.10.0
libtpu: 0.0.40
codegen_flags: <defaults>
</compile_context>

<pallas_src>
import jax
import jax.numpy as jnp
from jax.experimental import pallas as pl
from jax.experimental.pallas import tpu as pltpu


# ----------------------------- kernel ------------------------------------- #

def _mlp_kernel(x_ref, wgu_ref, wd_ref, o_ref, acc_ref):
    # x_ref  : (tm, H)     token tile (resident across the k axis)
    # wgu_ref: (2, H, tI)  [gate.T tile, up.T tile] (streamed over k)
    # wd_ref : (tI, H)     down_proj.T tile (streamed over k)
    # o_ref  : (tm, H)     output tile (written at k == last)
    # acc_ref: (tm, H)     f32 accumulator scratch
    k = pl.program_id(1)

    @pl.when(k == 0)
    def _init():
        acc_ref[...] = jnp.zeros_like(acc_ref)

    x = x_ref[...]                      # (tm, H)
    wg = wgu_ref[0]                     # (H, tI)
    wu = wgu_ref[1]                     # (H, tI)

    # gate / up projections on the MXU, f32 accumulation
    g = jnp.dot(x, wg, preferred_element_type=jnp.float32)
    u = jnp.dot(x, wu, preferred_element_type=jnp.float32)

    # SiLU(g) * u   (sigmoid goes to the EUP -> essentially free slot-wise)
    h = (g * jax.nn.sigmoid(g)) * u

    # partial down projection for this I-slice, accumulated in f32
    acc_ref[...] += jnp.dot(h.astype(wd_ref.dtype), wd_ref[...],
                            preferred_element_type=jnp.float32)

    @pl.when(k == pl.num_programs(1) - 1)
    def _finalize():
        o_ref[...] = acc_ref[...].astype(o_ref.dtype)


# ----------------------------- wrapper ------------------------------------ #

def prepare_qwen2_mlp_weights(w_gate, w_up, w_down):
    """One-time (model-load) weight prep from torch nn.Linear layout.

    w_gate, w_up: (I, H); w_down: (H, I)  (PyTorch (out_features, in_features)).
    Returns w_gu: (2, H, I) and w_down_t: (I, H).  Doing this once avoids
    per-forward-call weight transposes (an extra full HBM pass of the weights).
    """
    w_gu = jnp.stack([w_gate.T, w_up.T], axis=0)   # (2, H, I)
    return w_gu, w_down.T                          # (I, H)


def _round_up(x, m):
    return ((x + m - 1) // m) * m


def _largest_divisor_tile(total, preferred, align):
    """Largest multiple of `align` dividing `total`, <= `preferred`.
    Falls back to the full extent when no aligned divisor exists (keeps the
    (8,128) BlockSpec constraint satisfied via the full-dim exemption)."""
    if total <= preferred or total % align != 0:
        return total
    t = (preferred // align) * align
    while t >= align:
        if total % t == 0:
            return t
        t -= align
    return total


def qwen2_edge_mlp(x, w_gu, w_down_t, *, tm=None, ti=None):
    """x: (T, H); w_gu: (2, H, I); w_down_t: (I, H) -> (T, H)."""
    T, H = x.shape
    I = w_down_t.shape[0]
    assert w_gu.shape == (2, H, I)
    assert w_down_t.shape == (I, H)

    # ---- tile selection -------------------------------------------------- #
    # Token tile: 256 keeps the 256-wide v6e/v7x MXU full and gives >=2 grid
    # steps (pipelining + v7x dual-TC sharding) once T > 256; 256 is also a
    # multiple of 128 so it is fine for v5e's 128x128 MXU.
    if tm is None:
        tm = min(256, _round_up(T, 8))
    tm = max(8, _round_up(tm, 8))
    T_pad = _round_up(T, tm)

    # Intermediate tile: 128-lane aligned, ~2048 fits comfortably in v7x's
    # 64 MiB VMEM at tm=256 with double-buffered bf16 weight tiles.
    if ti is None:
        ti = _largest_divisor_tile(I, 2048, 128)
    assert I % ti == 0

    x_p = x if T_pad == T else jnp.pad(x, ((0, T_pad - T), (0, 0)))

    grid = (T_pad // tm, I // ti)

    # Rough per-step VMEM footprint (double-buffered ins/outs + scratch +
    # f32 intermediates) -> raise the scoped VMEM limit accordingly.
    xb = jnp.dtype(x.dtype).itemsize
    wb = jnp.dtype(w_gu.dtype).itemsize
    est = (2 * tm * H * xb            # x tile, double-buffered
           + 2 * 2 * H * ti * wb      # fused gate/up weight tile
           + 2 * ti * H * wb          # down weight tile
           + 2 * tm * H * xb          # output tile
           + tm * H * 4               # f32 accumulator scratch
           + 3 * tm * ti * 4)         # g, u, h intermediates
    vmem_limit = int(min(100 * 2**20, max(32 * 2**20, int(est * 1.25))))

    cost = pl.CostEstimate(
        flops=6 * T_pad * H * I,                 # 3 matmuls, 2*M*N*K each
        transcendentals=T_pad * I,               # sigmoid in SiLU
        bytes_accessed=2 * T_pad * H * xb + 3 * H * I * wb * grid[0],
    )

    out = pl.pallas_call(
        _mlp_kernel,
        out_shape=jax.ShapeDtypeStruct((T_pad, H), x.dtype),
        grid_spec=pltpu.PrefetchScalarGridSpec(
            num_scalar_prefetch=0,
            grid=grid,
            in_specs=[
                pl.BlockSpec((tm, H), lambda i, k: (i, 0)),        # x tile
                pl.BlockSpec((2, H, ti), lambda i, k: (0, 0, k)),  # gate/up
                pl.BlockSpec((ti, H), lambda i, k: (k, 0)),        # down
            ],
            out_specs=pl.BlockSpec((tm, H), lambda i, k: (i, 0)),
            scratch_shapes=[pltpu.VMEM((tm, H), jnp.float32)],
        ),
        compiler_params=pltpu.CompilerParams(
            dimension_semantics=("parallel", "arbitrary"),
            vmem_limit_bytes=vmem_limit,
        ),
        cost_estimate=cost,
    )(x_p, w_gu, w_down_t)

    return out if T_pad == T else out[:T]


# ----------------------------- reference / test ---------------------------- #

def _reference(x, w_gate, w_up, w_down):
    g = x @ w_gate.T
    u = x @ w_up.T
    h = (g * jax.nn.sigmoid(g)) * u
    return h @ w_down.T


if __name__ == "__main__":
    # Small config consistent with the module: hidden_size=32, intermediate_size=64.
    batch, seq, hidden, inter = 2, 8, 32, 64

    key = jax.random.PRNGKey(0)
    kx, kg, ku, kd = jax.random.split(key, 4)

    x = jax.random.normal(kx, (batch, seq, hidden), dtype=jnp.float32)
    # Deterministic parameters (nn.Linear layout: (out_features, in_features)).
    w_gate = jax.random.normal(kg, (inter, hidden), dtype=jnp.float32) * 0.05
    w_up   = jax.random.normal(ku, (inter, hidden), dtype=jnp.float32) * 0.05
    w_down = jax.random.normal(kd, (hidden, inter), dtype=jnp.float32) * 0.05

    # One-time weight prep (model-load time in a real deployment).
    w_gu, w_down_t = prepare_qwen2_mlp_weights(w_gate, w_up, w_down)

    # Flatten (B, S, H) -> (T, H) for the kernel, reshape back after.
    x2d = x.reshape(batch * seq, hidden)
    out2d = qwen2_edge_mlp(x2d, w_gu, w_down_t)
    out = jax.block_until_ready(out2d.reshape(batch, seq, hidden))

    # Correctness check against pure-JAX reference of the torch semantics.
    ref = _reference(x, w_gate, w_up, w_down)
    assert jnp.allclose(out, ref, atol=1e-5, rtol=1e-5), (
        float(jnp.max(jnp.abs(out - ref))))

    print("KERNEL_OK")
</pallas_src>

<mosaic_0001>
module attributes {stable_mosaic.version = 11 : i64} {
  func.func @_mlp_kernel(%arg0: i32, %arg1: i32, %arg2: memref<16x32xf32, #tpu.memory_space<vmem>>, %arg3: memref<2x32x64xf32, #tpu.memory_space<vmem>>, %arg4: memref<64x32xf32, #tpu.memory_space<vmem>>, %arg5: memref<16x32xf32, #tpu.memory_space<vmem>>, %arg6: memref<16x32xf32, #tpu.memory_space<vmem>>) attributes {dimension_semantics = [#tpu.dimension_semantics<parallel>, #tpu.dimension_semantics<arbitrary>], iteration_bounds = array<i64: 1, 1>, scalar_prefetch = 0 : i64, scratch_operands = 1 : i64, tpu.core_type = #tpu.core_type<tc>, window_params = [{transform_indices = @transform_0, window_bounds = array<i64: 16, 32>}, {transform_indices = @transform_1, window_bounds = array<i64: 2, 32, 64>}, {transform_indices = @transform_2, window_bounds = array<i64: 64, 32>}, {transform_indices = @transform_3, window_bounds = array<i64: 16, 32>}]} {
    %c0_i32 = arith.constant 0 : i32
    %0 = arith.cmpi eq, %arg1, %c0_i32 : i32
    %1 = arith.extui %0 : i1 to i32
    %c0_i32_0 = arith.constant 0 : i32
    %2 = arith.cmpi ne, %1, %c0_i32_0 : i32
    scf.if %2 {
      %cst_18 = arith.constant 0.000000e+00 : f32
      %25 = vector.broadcast %cst_18 : f32 to vector<16x32xf32>
      %c0_19 = arith.constant 0 : index
      %c0_20 = arith.constant 0 : index
      %26 = vector.load %arg6[%c0_19, %c0_20] : memref<16x32xf32, #tpu.memory_space<vmem>>, vector<16x32xf32>
      tpu.vector_store %arg6[%c0_19, %c0_20], %25 {strides = array<i32>} : memref<16x32xf32, #tpu.memory_space<vmem>>, vector<16x32xf32>,
    } else {
    }
    %c0 = arith.constant 0 : index
    %c0_1 = arith.constant 0 : index
    %3 = vector.load %arg2[%c0, %c0_1] : memref<16x32xf32, #tpu.memory_space<vmem>>, vector<16x32xf32>
    %c0_2 = arith.constant 0 : index
    %c0_3 = arith.constant 0 : index
    %c0_4 = arith.constant 0 : index
    %4 = vector.load %arg3[%c0_2, %c0_3, %c0_4] : memref<2x32x64xf32, #tpu.memory_space<vmem>>, vector<1x32x64xf32>
    %5 = vector.shape_cast %4 : vector<1x32x64xf32> to vector<32x64xf32>
    %c1 = arith.constant 1 : index
    %c0_5 = arith.constant 0 : index
    %c0_6 = arith.constant 0 : index
    %6 = vector.load %arg3[%c1, %c0_5, %c0_6] : memref<2x32x64xf32, #tpu.memory_space<vmem>>, vector<1x32x64xf32>
    %7 = vector.shape_cast %6 : vector<1x32x64xf32> to vector<32x64xf32>
    %cst = arith.constant dense<0.000000e+00> : vector<16x64xf32>
    %8 = tpu.matmul %3, %5, %cst {dimension_numbers = #tpu.dot_dimension_numbers<[1], [0], [0], [1], [0, 0, 1, 1], [], []>} : vector<16x32xf32>, vector<32x64xf32>, vector<16x64xf32> -> vector<16x64xf32>
    %cst_7 = arith.constant dense<0.000000e+00> : vector<16x64xf32>
    %9 = tpu.matmul %3, %7, %cst_7 {dimension_numbers = #tpu.dot_dimension_numbers<[1], [0], [0], [1], [0, 0, 1, 1], [], []>} : vector<16x32xf32>, vector<32x64xf32>, vector<16x64xf32> -> vector<16x64xf32>
    %10 = arith.negf %8 : vector<16x64xf32>
    %11 = math.exp %10 : vector<16x64xf32>
    %cst_8 = arith.constant 1.000000e+00 : f32
    %12 = vector.broadcast %cst_8 : f32 to vector<16x64xf32>
    %13 = arith.addf %12, %11 : vector<16x64xf32>
    %14 = arith.divf %12, %13 : vector<16x64xf32>
    %15 = arith.mulf %8, %14 : vector<16x64xf32>
    %16 = arith.mulf %15, %9 : vector<16x64xf32>
    %c0_9 = arith.constant 0 : index
    %c0_10 = arith.constant 0 : index
    %17 = vector.load %arg6[%c0_9, %c0_10] : memref<16x32xf32, #tpu.memory_space<vmem>>, vector<16x32xf32>
    %c0_11 = arith.constant 0 : index
    %c0_12 = arith.constant 0 : index
    %18 = vector.load %arg4[%c0_11, %c0_12] : memref<64x32xf32, #tpu.memory_space<vmem>>, vector<64x32xf32>
    %cst_13 = arith.constant dense<0.000000e+00> : vector<16x32xf32>
    %19 = tpu.matmul %16, %18, %cst_13 {dimension_numbers = #tpu.dot_dimension_numbers<[1], [0], [0], [1], [0, 0, 1, 1], [], []>} : vector<16x64xf32>, vector<64x32xf32>, vector<16x32xf32> -> vector<16x32xf32>
    %20 = arith.addf %17, %19 : vector<16x32xf32>
    %c0_14 = arith.constant 0 : index
    %c0_15 = arith.constant 0 : index
    %21 = vector.load %arg6[%c0_14, %c0_15] : memref<16x32xf32, #tpu.memory_space<vmem>>, vector<16x32xf32>
    tpu.vector_store %arg6[%c0_14, %c0_15], %20 {strides = array<i32>} : memref<16x32xf32, #tpu.memory_space<vmem>>, vector<16x32xf32>,
    %c0_i32_16 = arith.constant 0 : i32
    %22 = arith.cmpi eq, %arg1, %c0_i32_16 : i32
    %23 = arith.extui %22 : i1 to i32
    %c0_i32_17 = arith.constant 0 : i32
    %24 = arith.cmpi ne, %23, %c0_i32_17 : i32
    scf.if %24 {
      %c0_18 = arith.constant 0 : index
      %c0_19 = arith.constant 0 : index
      %25 = vector.load %arg6[%c0_18, %c0_19] : memref<16x32xf32, #tpu.memory_space<vmem>>, vector<16x32xf32>
      %c0_20 = arith.constant 0 : index
      %c0_21 = arith.constant 0 : index
      %26 = vector.load %arg5[%c0_20, %c0_21] : memref<16x32xf32, #tpu.memory_space<vmem>>, vector<16x32xf32>
      tpu.vector_store %arg5[%c0_20, %c0_21], %25 {strides = array<i32>} : memref<16x32xf32, #tpu.memory_space<vmem>>, vector<16x32xf32>,
    } else {
    }
    return
  }
  func.func @transform_0(%arg0: i32, %arg1: i32) -> (i32, i32) {
    %c0_i32 = arith.constant 0 : i32
    %c0_i32_0 = arith.constant 0 : i32
    return %arg0, %c0_i32 : i32, i32
  }
  func.func @transform_1(%arg0: i32, %arg1: i32) -> (i32, i32, i32) {
    %c0_i32 = arith.constant 0 : i32
    %c0_i32_0 = arith.constant 0 : i32
    %c0_i32_1 = arith.constant 0 : i32
    return %c0_i32, %c0_i32_0, %arg1 : i32, i32, i32
  }
  func.func @transform_2(%arg0: i32, %arg1: i32) -> (i32, i32) {
    %c0_i32 = arith.constant 0 : i32
    %c0_i32_0 = arith.constant 0 : i32
    return %arg1, %c0_i32 : i32, i32
  }
  func.func @transform_3(%arg0: i32, %arg1: i32) -> (i32, i32) {
    %c0_i32 = arith.constant 0 : i32
    %c0_i32_0 = arith.constant 0 : i32
    return %arg0, %c0_i32 : i32, i32
  }
}

</mosaic_0001>

<llo_original>
// kernel: tpu_custom_call.1
$region0: #{tpu_custom_call.1}
  #allocation0 [shape = 'u32[]', space=smem, size = 0x4, offset = 0x4, fixed_abs, tag = 'smem constant byte address 0x4 - core index']
  #allocation1 [shape = 'u32[72,128]{1,0:T(1,128)}', space=vmem, size = 0x9000, scoped, tag = 'internal scratch']
  #allocation2 [shape = 'f32[16,32]{1,0:T(8,128)}', space=vmem, size = 0x2000, scoped, tag = 'scratch operand']
  %s0 = inlined_call_operand.vmem [shape: f32[16,32], index: 0, kind: input, shape index: {}]
  %s1 = inlined_call_operand.vmem [shape: f32[2,32,64], index: 1, kind: input, shape index: {}]
  %s2 = inlined_call_operand.vmem [shape: f32[64,32], index: 2, kind: input, shape index: {}]
  %s3 = inlined_call_operand.hbm [shape: f32[16,32], index: 3, kind: output, shape index: {}]
  %s4 = sld [smem:[#allocation0]]
  $region30: #{tpu_custom_call.1} parent=0
    _
  %s6 = ssub.s32 1, %s4
  %s7 = scalar_select 0, %s6, %s4
  $region1: #{tpu_custom_call.1} parent=0
    #allocation3 [shape = 'u8[8192]{0}', space=vmem, size = 0x2000, scoped, tag = 'output window, operand 0, single buffered']
    #allocation4 [shape = 's32[1]{0}', space=sflag, size = 0x4, scoped, tag = 'scoped memory for tpu_custom_call.1']
    %8 = vsyncpa [#allocation4], 0
    // Predicated region
    $region2: #{tpu_custom_call.1} parent=1 // pred_check
      _
    $region3: #{tpu_custom_call.1} parent=1 // pred_check_branch
      %10 = sbr.rel (0) target = $region5
    $region4: #{tpu_custom_call.1} parent=1 // pred_region
      _
    $region5: #{tpu_custom_call.1} parent=1 // pred_fallthru
      _
    // Predicated region
    $region6: #{tpu_custom_call.1} parent=1 // pred_check
      _
    $region7: #{tpu_custom_call.1} parent=1 // pred_check_branch
      %12 = sbr.rel (0) target = $region9
    $region8: #{tpu_custom_call.1} parent=1 // pred_region
      _
    $region9: #{tpu_custom_call.1} parent=1 // pred_fallthru
      _
    // Predicated region
    $region10: #{tpu_custom_call.1} parent=1 // pred_check
      _
    $region11: #{tpu_custom_call.1} parent=1 // pred_check_branch
      %14 = sbr.rel (0) target = $region13
    $region12: #{tpu_custom_call.1} parent=1 // pred_region
      _
    $region13: #{tpu_custom_call.1} parent=1 // pred_fallthru
      _
    %p15 = scmp.eq.s32.totalorder 0, 0
    // Predicated region
    $region14: #{tpu_custom_call.1} parent=1 // pred_check
      %p16 = pneg %p15
    $region15: #{tpu_custom_call.1} parent=1 // pred_check_branch
      %18 = sbr.rel (%p16) target = $region17
    $region16: #{tpu_custom_call.1} parent=1 // pred_region
      %vm19 = vcmask 261120
      %20 = vst.msk [vmem:[#allocation2] sm:$0xff] %vm19, 0.0
      %21 = vst.msk [vmem:[#allocation2 + $0x8] sm:$0xff] %vm19, 0.0
    $region17: #{tpu_custom_call.1} parent=1 // pred_fallthru
      _
    %v22 = vld [vmem:[%s0] sm:$0xff]
    %v23 = vld [vmem:[%s0 + $0x8] sm:$0xff]
    %v24 = vld [vmem:[%s1] sm:$0xff]
    %v25 = vld [vmem:[%s1 + $0x8] sm:$0xff]
    %v26 = vld [vmem:[%s1 + $0x10] sm:$0xff]
    %v27 = vld [vmem:[%s1 + $0x18] sm:$0xff]
    %s28 = scalar_lea.vmem %s1, 32
    %v29 = vld [vmem:[%s28] sm:$0xff]
    %v30 = vld [vmem:[%s28 + $0x8] sm:$0xff]
    %v31 = vld [vmem:[%s28 + $0x10] sm:$0xff]
    %v32 = vld [vmem:[%s28 + $0x18] sm:$0xff]
    %vm33 = vcmask 261120
    %v35 = vsel %vm33, %v22, 0
    %v38 = vsel %vm33, %v23, 0
    %40 = vmatpush.msra.mxu0 0.0
    %41 = vmatpush.msra.mxu0 0.0
    %42 = vmatpush.msra.mxu0 0.0
    %43 = vmatpush.msra.mxu0 0.0
    %44 = vmatpush.msra.mxu0 0.0
    %45 = vmatpush.msra.mxu0 0.0
    %46 = vmatpush.msra.mxu0 0.0
    %47 = vmatpush.msra.mxu0 0.0
    %48 = vmatpush.msra.mxu0 0.0
    %49 = vmatpush.msra.mxu0 0.0
    %50 = vmatpush.msra.mxu0 0.0
    %51 = vmatpush.msra.mxu0 0.0
    %52 = vmatpush.msra.mxu0 %v27
    %53 = vmatpush.msra.mxu0 %v26
    %54 = vmatpush.msra.mxu0 %v25
    %55 = vmatpush.msra.mxu0 %v24
    %56 = vmatmul.f32.gmra.mxu0 %v35
    %v57 = vpop.f32.mrf.mxu0
    %v58 = vadd.f32 0.0, %v57
    %59 = vmatmul.f32.gmra.mxu0 %v38
    %v60 = vpop.f32.mrf.mxu0
    %v61 = vadd.f32 0.0, %v60
    %62 = vdwg.mxu0
    %63 = vmatpush.msra.mxu0 0.0
    %64 = vmatpush.msra.mxu0 0.0
    %65 = vmatpush.msra.mxu0 0.0
    %66 = vmatpush.msra.mxu0 0.0
    %67 = vmatpush.msra.mxu0 0.0
    %68 = vmatpush.msra.mxu0 0.0
    %69 = vmatpush.msra.mxu0 0.0
    %70 = vmatpush.msra.mxu0 0.0
    %71 = vmatpush.msra.mxu0 0.0
    %72 = vmatpush.msra.mxu0 0.0
    %73 = vmatpush.msra.mxu0 0.0
    %74 = vmatpush.msra.mxu0 0.0
    %75 = vmatpush.msra.mxu0 %v32
    %76 = vmatpush.msra.mxu0 %v31
    %77 = vmatpush.msra.mxu0 %v30
    %78 = vmatpush.msra.mxu0 %v29
    %79 = vmatmul.f32.gmra.mxu0 %v35
    %v80 = vpop.f32.mrf.mxu0
    %v81 = vadd.f32 0.0, %v80
    %82 = vmatmul.f32.gmra.mxu0 %v38
    %v83 = vpop.f32.mrf.mxu0
    %v84 = vadd.f32 0.0, %v83
    %85 = vdwg.mxu0
    %v86 = vxor.u32 %v58, 2147483648
    %v87 = vxor.u32 %v61, 2147483648
    %v88 = vmul.f32 %v86, 1.442695
    %v89 = vpow.pop %v88
    %v90 = vmul.f32 %v87, 1.442695
    %v91 = vpow.pop %v90
    %v92 = vadd.f32 %v89, 1.0
    %v93 = vadd.f32 %v91, 1.0
    %v94 = vrcp.pop %v92
    %v95 = vmul.f32 %v92, %v94
    %v96 = vsub.f32 1.0, %v95
    %v97 = vmul.f32 %v94, %v96
    %v98 = vadd.f32 %v94, %v97
    %vm99 = vweird.f32 %v92
    %vm100 = vweird.f32 %v94
    %vm101 = vmor %vm99, %vm100
    %v102 = vsel %vm101, %v94, %v98
    %v103 = vand.u32 2147483647, %v92
    %vm104 = vcmp.eq.f32.partialorder %v103, 8.507059e+37
    %v105 = vand.u32 %v92, 2147483648
    %v106 = vor.u32 1.1754944e-38, %v105
    %v107 = vsel %vm104, %v106, %v102
    %v108 = vmul.f32 1.0, %v107
    %v109 = vrcp.pop %v93
    %v110 = vmul.f32 %v93, %v109
    %v111 = vsub.f32 1.0, %v110
    %v112 = vmul.f32 %v109, %v111
    %v113 = vadd.f32 %v109, %v112
    %vm114 = vweird.f32 %v93
    %vm115 = vweird.f32 %v109
    %vm116 = vmor %vm114, %vm115
    %v117 = vsel %vm116, %v109, %v113
    %v118 = vand.u32 2147483647, %v93
    %vm119 = vcmp.eq.f32.partialorder %v118, 8.507059e+37
    %v120 = vand.u32 %v93, 2147483648
    %v121 = vor.u32 1.1754944e-38, %v120
    %v122 = vsel %vm119, %v121, %v117
    %v123 = vmul.f32 1.0, %v122
    %v124 = vmul.f32 %v58, %v108
    %v125 = vmul.f32 %v61, %v123
    %v126 = vmul.f32 %v124, %v81
    %v127 = vmul.f32 %v125, %v84
    %v128 = vld [vmem:[#allocation2] sm:$0xff]
    %v129 = vld [vmem:[#allocation2 + $0x8] sm:$0xff]
    %v130 = vld [vmem:[%s2] sm:$0xff]
    %v131 = vld [vmem:[%s2 + $0x8] sm:$0xff]
    %v132 = vld [vmem:[%s2 + $0x10] sm:$0xff]
    %v133 = vld [vmem:[%s2 + $0x18] sm:$0xff]
    %v134 = vld [vmem:[%s2 + $0x20] sm:$0xff]
    %v135 = vld [vmem:[%s2 + $0x28] sm:$0xff]
    %v136 = vld [vmem:[%s2 + $0x30] sm:$0xff]
    %v137 = vld [vmem:[%s2 + $0x38] sm:$0xff]
    %vm138 = vcmask 523264
    %v140 = vsel %vm138, %v126, 0
    %v143 = vsel %vm138, %v127, 0
    %145 = vmatpush.msra.mxu0 0.0
    %146 = vmatpush.msra.mxu0 0.0
    %147 = vmatpush.msra.mxu0 0.0
    %148 = vmatpush.msra.mxu0 0.0
    %149 = vmatpush.msra.mxu0 0.0
    %150 = vmatpush.msra.mxu0 0.0
    %151 = vmatpush.msra.mxu0 0.0
    %152 = vmatpush.msra.mxu0 0.0
    %153 = vmatpush.msra.mxu0 %v137
    %154 = vmatpush.msra.mxu0 %v136
    %155 = vmatpush.msra.mxu0 %v135
    %156 = vmatpush.msra.mxu0 %v134
    %157 = vmatpush.msra.mxu0 %v133
    %158 = vmatpush.msra.mxu0 %v132
    %159 = vmatpush.msra.mxu0 %v131
    %160 = vmatpush.msra.mxu0 %v130
    %161 = vmatmul.f32.gmra.mxu0 %v140
    %v162 = vpop.f32.mrf.mxu0
    %v163 = vadd.f32 0.0, %v162
    %164 = vmatmul.f32.gmra.mxu0 %v143
    %v165 = vpop.f32.mrf.mxu0
    %v166 = vadd.f32 0.0, %v165
    %167 = vdwg.mxu0
    %v168 = vadd.f32 %v128, %v163
    %v169 = vadd.f32 %v129, %v166
    %170 = vst.msk [vmem:[#allocation2] sm:$0xff] %vm33, %v168
    %171 = vst.msk [vmem:[#allocation2 + $0x8] sm:$0xff] %vm33, %v169
    // Predicated region
    $region18: #{tpu_custom_call.1} parent=1 // pred_check
      %p172 = pneg %p15
    $region19: #{tpu_custom_call.1} parent=1 // pred_check_branch
      %174 = sbr.rel (%p172) target = $region21
    $region20: #{tpu_custom_call.1} parent=1 // pred_region
      %v175 = vld [vmem:[#allocation2] sm:$0xff]
      %v176 = vld [vmem:[#allocation2 + $0x8] sm:$0xff]
      %177 = vst.msk [vmem:[#allocation3] sm:$0xff] %vm33, %v175
      %178 = vst.msk [vmem:[#allocation3 + $0x8] sm:$0xff] %vm33, %v176
    $region21: #{tpu_custom_call.1} parent=1 // pred_fallthru
      _
    // Predicated region
    $region22: #{tpu_custom_call.1} parent=1 // pred_check
      _
    $region23: #{tpu_custom_call.1} parent=1 // pred_check_branch
      %180 = sbr.rel (0) target = $region25
    $region24: #{tpu_custom_call.1} parent=1 // pred_region
      %182 = vsyncadd [#allocation4], 0
      %s183 = sshll.u32 [#allocation3], 4
      %s184 = int_to_ptr.vmem [resolvable:$true] %s183
      %s185 = sshll.u32 %s3, 4
      %s186 = int_to_ptr.hbm [resolvable:$true] %s185
      %191 = dma.vmem_to_hbm [thread:$0]  %s184, 256, %s186, [#allocation4], 128, 128, 8
    $region25: #{tpu_custom_call.1} parent=1 // pred_fallthru
      _
    // Predicated region
    $region26: #{tpu_custom_call.1} parent=1 // pred_check
      _
    $region27: #{tpu_custom_call.1} parent=1 // pred_check_branch
      %193 = sbr.rel (0) target = $region29
    $region28: #{tpu_custom_call.1} parent=1 // pred_region
      %195 = dma.done [#allocation4], 256
    $region29: #{tpu_custom_call.1} parent=1 // pred_fallthru
      _
    %196 = vsyncpa [#allocation4], 1

</llo_original>
